<compile_context>
chip_gen: v7x
topology: tpu7x:2x2x1
jax: 0.10.0
libtpu: 0.0.40
codegen_flags: <defaults>
</compile_context>

<pallas_src>
import functools
import math

import jax
import jax.numpy as jnp
from jax.experimental import pallas as pl
from jax.experimental.pallas import tpu as pltpu

_LANE = 128
_SUBLANE = 8
_NEG = -1e30          # finite "-inf" sentinel for padded columns (f32 score math)
_ROW_TILE_CAP = 512   # max output rows per grid step


def _round_up(v, m):
    return (v + m - 1) // m * m


def _cdiv(a, b):
    return -(-a // b)


def _vmem_capacity():
    try:
        return int(pltpu.get_tpu_info().vmem_capacity_bytes)
    except Exception:
        return 64 << 20   # v7x-safe fallback


def _clamp_limit(need_bytes, cap_bytes):
    need = int(need_bytes * 1.4) + (4 << 20)
    return max(16 << 20, min(need, int(cap_bytes * 0.75)))


def _proj_kernel(x_ref, w_ref, h_ref, *, ones_col):
    # h = x @ [W | W a1 | W a2] for one row tile; bf16 MXU operands, f32 acc.
    h = jnp.dot(x_ref[...], w_ref[...], preferred_element_type=jnp.float32)
    # Stamp 1.0 into spare lane `ones_col`: stage 2 folds the softmax row-sum
    # into the MXU by reading acc[:, ones_col].  Padded attention columns have
    # p == 0, so an unconditional write is safe.
    lane = jax.lax.broadcasted_iota(jnp.int32, h.shape, 1)
    h = jnp.where(lane == ones_col, 1.0, h)
    h_ref[...] = h.astype(h_ref.dtype)


def _attn_kernel(f2_ref, m_ref, f1_ref, h_ref, o_ref, acc_ref, *,
                 alpha, ones_col):
    j = pl.program_id(1)

    @pl.when(j == 0)
    def _init():
        acc_ref[...] = jnp.zeros_like(acc_ref)

    # e[i, j] = LeakyReLU(att2(h)[i] + att1(h)[j]); f1 arrives lane-dense
    # (1, tk), f2 is (tm, 1) -> pure VPU broadcast-add.  f32 statistics.
    s = f2_ref[...] + f1_ref[...]                               # (tm, tk)
    if 0.0 < alpha < 1.0:
        e = jnp.maximum(s, alpha * s)                           # LeakyReLU
    else:
        e = jnp.where(s >= 0, s, alpha * s)
    # m is the *exact* row max (rank-1 scores + monotone LeakyReLU), so there
    # are no online-softmax corrections and no serial acc rescale across j.
    p = jnp.exp(e - m_ref[...])                                 # <= 1, padded cols -> 0
    acc_ref[...] += jnp.dot(p.astype(h_ref.dtype), h_ref[...],
                            preferred_element_type=jnp.float32)

    @pl.when(j == pl.num_programs(1) - 1)
    def _finalize():
        # TODO(synk): Dropout after softmax is identity in eval mode; training
        # mode dropout (pltpu.prng_*) intentionally not implemented.
        acc = acc_ref[...]
        l = acc[:, ones_col:ones_col + 1]         # softmax denominator (from MXU)
        inv = pl.reciprocal(l, approx=True)       # EUP slot
        inv = inv * (2.0 - l * inv)               # one Newton step -> ~f32 exact
        o_ref[...] = (acc * inv).astype(o_ref.dtype)


def graph_attn(x, adj, w_tran, a1, a2, *, alpha):
    """GraphAttn forward.

    x: (N, F_in); adj: accepted but unused (parity with the PyTorch forward).
    w_tran: (F_in, F_out) == tran.weight.T ; a1, a2: (F_out, 1) == att{1,2}.weight.T
    """
    del adj  # the reference forward never uses the adjacency matrix
    N, f_in = x.shape
    f_out = w_tran.shape[1]
    out_dtype = x.dtype
    o_isz = jnp.dtype(out_dtype).itemsize
    cdtype = jnp.bfloat16        # MXU operand / h storage dtype (f32 accumulation)
    c_isz = 2
    alpha = float(alpha)

    # ---- padded / tiled geometry --------------------------------------------
    f_in_p = _round_up(f_in, _LANE)
    # +3 spare lanes: folded att1/att2 projection columns + the "ones" column
    # that computes the softmax denominator on the MXU.
    f_out_p = _round_up(f_out + 3, _LANE)
    ones_col = f_out + 2

    # Row tiles: <=512 rows each; even tile count when >1 so the "parallel"
    # grid axis balances across v7x's two TensorCores.
    n_row_tiles = _cdiv(N, _ROW_TILE_CAP)
    if n_row_tiles > 1 and n_row_tiles % 2:
        n_row_tiles += 1
    tm = _round_up(_cdiv(N, n_row_tiles), _SUBLANE)
    n_pr = tm * n_row_tiles

    # Column (softmax reduction) tiles: as large as the VMEM budget allows so h
    # stays resident (single column tile -> h DMA'd from HBM exactly once).
    cap = _vmem_capacity()
    budget = min(max(cap // 3, 20 << 20), 80 << 20)
    fixed = (tm * f_out_p * 4                 # f32 accumulator scratch
             + 2 * tm * f_out_p * o_isz       # double-buffered output block
             + 6 * tm * _LANE * 4             # f2 / m blocks (lane padded, 2 bufs)
             + (2 << 20))                     # headroom
    per_col = 24 * tm + 2 * f_out_p * c_isz + 8   # e/p temporaries + h (2 bufs) + f1
    tk_cap = max(_LANE, (max(budget - fixed, 0) // per_col) // _LANE * _LANE)
    n_col_tiles = max(1, _cdiv(N, tk_cap))
    tk = _round_up(_cdiv(N, n_col_tiles), _LANE)
    n_pc = tk * n_col_tiles

    # ---- operand packing (zero padding is an exact no-op everywhere) --------
    x_p = jnp.zeros((n_pc, f_in_p), cdtype).at[:N, :f_in].set(x.astype(cdtype))
    # Fold att1/att2 into spare output lanes of the projection weight: columns
    # f_out / f_out+1 of h become att1(h) / att2(h) for free.
    wa = (w_tran.astype(jnp.float32)
          @ jnp.concatenate([a1, a2], axis=1).astype(jnp.float32))   # (F_in, 2)
    w_aug = jnp.zeros((f_in_p, f_out_p), jnp.float32)
    w_aug = w_aug.at[:f_in, :f_out].set(w_tran.astype(jnp.float32))
    w_aug = w_aug.at[:f_in, f_out:f_out + 2].set(wa)
    w_p = w_aug.astype(cdtype)

    # ---- stage 1: h = x @ [W | W a1 | W a2] (row-tiled, bf16 MXU) ------------
    tp = tk   # stage-1 row tile (always divides n_pc)
    s1_bytes = 2 * (tp * f_in_p + f_in_p * f_out_p + tp * f_out_p) * c_isz
    h_full = pl.pallas_call(
        functools.partial(_proj_kernel, ones_col=ones_col),
        out_shape=jax.ShapeDtypeStruct((n_pc, f_out_p), cdtype),
        grid=(n_pc // tp,),
        in_specs=[
            pl.BlockSpec((tp, f_in_p), lambda i: (i, 0)),
            pl.BlockSpec((f_in_p, f_out_p), lambda i: (0, 0)),
        ],
        out_specs=pl.BlockSpec((tp, f_out_p), lambda i: (i, 0)),
        compiler_params=pltpu.CompilerParams(
            dimension_semantics=("parallel",),
            vmem_limit_bytes=_clamp_limit(s1_bytes, cap),
        ),
    )(x_p, w_p)

    # ---- attention score terms (tiny O(N) wrapper ops, f32) -----------------
    f1 = h_full[:N, f_out].astype(jnp.float32)         # att1(h): column term
    f2 = h_full[:N, f_out + 1].astype(jnp.float32)     # att2(h): row term
    f1_row = jnp.full((1, n_pc), _NEG, jnp.float32).at[0, :N].set(f1)
    f2_col = jnp.zeros((n_pr, 1), jnp.float32).at[:N, 0].set(f2)
    # Exact per-row max: scores are rank-1 and LeakyReLU is monotone, so
    # max_j e[i, j] = LeakyReLU(f2[i] + max_j f1[j]).
    s_max = f2_col + jnp.max(f1)
    if 0.0 < alpha < 1.0:
        m_col = jnp.maximum(s_max, alpha * s_max)
    else:
        m_col = jnp.where(s_max >= 0, s_max, alpha * s_max)

    # ---- stage 2: scores + softmax + @h (no online-softmax corrections) -----
    s2_bytes = fixed + per_col * tk
    out_p = pl.pallas_call(
        functools.partial(_attn_kernel, alpha=alpha, ones_col=ones_col),
        out_shape=jax.ShapeDtypeStruct((n_pr, f_out_p), out_dtype),
        grid=(n_row_tiles, n_col_tiles),
        in_specs=[
            pl.BlockSpec((tm, 1), lambda i, j: (i, 0)),        # f2 (row term)
            pl.BlockSpec((tm, 1), lambda i, j: (i, 0)),        # exact row max m
            pl.BlockSpec((1, tk), lambda i, j: (0, j)),        # f1 (column term)
            # h: a single column tile whenever it fits VMEM -> constant block
            # index -> resident, fetched from HBM exactly once.
            # TODO(synk): on v5e, add pipeline_mode=pl.Buffered(3) here if the
            # streamed-h path (n_col_tiles > 1) is still DMA-bound.
            pl.BlockSpec((tk, f_out_p), lambda i, j: (j, 0)),
        ],
        out_specs=pl.BlockSpec((tm, f_out_p), lambda i, j: (i, 0)),
        scratch_shapes=[pltpu.VMEM((tm, f_out_p), jnp.float32)],
        compiler_params=pltpu.CompilerParams(
            dimension_semantics=("parallel", "arbitrary"),
            vmem_limit_bytes=_clamp_limit(s2_bytes, cap),
        ),
    )(f2_col, m_col, f1_row, h_full)

    return out_p[:N, :f_out]


def _reference(x, w_tran, a1, a2, alpha):
    h = x @ w_tran
    e = (h @ a2) + (h @ a1).reshape(1, -1)
    e = jnp.where(e >= 0, e, alpha * e)
    a = jax.nn.softmax(e, axis=1)
    return a @ h


def _make_inputs(key, n, f_in, f_out):
    kx, kadj, kw, ka1, ka2 = jax.random.split(key, 5)
    x = jax.random.normal(kx, (n, f_in), dtype=jnp.float32)
    adj = (jax.random.uniform(kadj, (n, n)) > 0.5).astype(jnp.float32)  # unused
    b_tran = 1.0 / math.sqrt(f_in)
    b_att = 1.0 / math.sqrt(f_out)
    w_tran = jax.random.uniform(kw, (f_in, f_out), jnp.float32, -b_tran, b_tran)
    a1 = jax.random.uniform(ka1, (f_out, 1), jnp.float32, -b_att, b_att)
    a2 = jax.random.uniform(ka2, (f_out, 1), jnp.float32, -b_att, b_att)
    return x, adj, w_tran, a1, a2


if __name__ == "__main__":
    ALPHA = 0.2  # LeakyReLU negative slope
    key = jax.random.PRNGKey(0)
    k_small, k_big = jax.random.split(key)

    # Small shapes consistent with the module (single grid point).
    x, adj, w_tran, a1, a2 = _make_inputs(k_small, 8, 16, 32)
    out = jax.block_until_ready(graph_attn(x, adj, w_tran, a1, a2, alpha=ALPHA))
    ref = _reference(x, w_tran, a1, a2, ALPHA)
    assert out.shape == (8, 32)
    # Tolerance reflects bf16 MXU operands (f32 accumulation / softmax stats).
    assert jnp.allclose(out, ref, atol=5e-3, rtol=5e-3), "mismatch (small)"

    # Larger odd-sized graph: exercises row tiling, padding/masking, the folded
    # denominator lane and the multi-row-tile accumulation path (grid (2, 1)).
    x, adj, w_tran, a1, a2 = _make_inputs(k_big, 520, 24, 40)
    out = jax.block_until_ready(graph_attn(x, adj, w_tran, a1, a2, alpha=ALPHA))
    ref = _reference(x, w_tran, a1, a2, ALPHA)
    assert out.shape == (520, 40)
    assert jnp.allclose(out, ref, atol=5e-3, rtol=5e-3), "mismatch (tiled)"

    print("KERNEL_OK")
</pallas_src>

<mosaic_0001>
module attributes {stable_mosaic.version = 11 : i64} {
  func.func @_proj_kernel(%arg0: i32, %arg1: memref<128x128xbf16, #tpu.memory_space<vmem>>, %arg2: memref<128x128xbf16, #tpu.memory_space<vmem>>, %arg3: memref<128x128xbf16, #tpu.memory_space<vmem>>) attributes {dimension_semantics = [#tpu.dimension_semantics<parallel>], iteration_bounds = array<i64: 1>, scalar_prefetch = 0 : i64, scratch_operands = 0 : i64, tpu.core_type = #tpu.core_type<tc>, window_params = [{transform_indices = @transform_0, window_bounds = array<i64: 128, 128>}, {pipeline_mode = #tpu.pipeline_mode<synchronous>, transform_indices = @transform_1, window_bounds = array<i64: 128, 128>}, {transform_indices = @transform_2, window_bounds = array<i64: 128, 128>}]} {
    %c0 = arith.constant 0 : index
    %c0_0 = arith.constant 0 : index
    %0 = vector.load %arg1[%c0, %c0_0] : memref<128x128xbf16, #tpu.memory_space<vmem>>, vector<128x128xbf16>
    %c0_1 = arith.constant 0 : index
    %c0_2 = arith.constant 0 : index
    %1 = vector.load %arg2[%c0_1, %c0_2] : memref<128x128xbf16, #tpu.memory_space<vmem>>, vector<128x128xbf16>
    %cst = arith.constant dense<0.000000e+00> : vector<128x128xf32>
    %2 = tpu.matmul %0, %1, %cst {dimension_numbers = #tpu.dot_dimension_numbers<[1], [0], [0], [1], [0, 0, 1, 1], [], []>} : vector<128x128xbf16>, vector<128x128xbf16>, vector<128x128xf32> -> vector<128x128xf32>
    %3 = tpu.iota {dimensions = array<i32: 1>} : vector<128x128xi32>
    %c34_i32 = arith.constant 34 : i32
    %4 = vector.broadcast %c34_i32 : i32 to vector<128x128xi32>
    %5 = arith.cmpi eq, %3, %4 : vector<128x128xi32>
    %cst_3 = arith.constant 1.000000e+00 : f32
    %6 = vector.broadcast %cst_3 : f32 to vector<128x128xf32>
    %7 = arith.select %5, %6, %2 : vector<128x128xi1>, vector<128x128xf32>
    %8 = arith.truncf %7 : vector<128x128xf32> to vector<128x128xbf16>
    %c0_4 = arith.constant 0 : index
    %c0_5 = arith.constant 0 : index
    %9 = vector.load %arg3[%c0_4, %c0_5] : memref<128x128xbf16, #tpu.memory_space<vmem>>, vector<128x128xbf16>
    tpu.vector_store %arg3[%c0_4, %c0_5], %8 {strides = array<i32>} : memref<128x128xbf16, #tpu.memory_space<vmem>>, vector<128x128xbf16>,
    return
  }
  func.func @transform_0(%arg0: i32) -> (i32, i32) {
    %c0_i32 = arith.constant 0 : i32
    %c0_i32_0 = arith.constant 0 : i32
    return %arg0, %c0_i32 : i32, i32
  }
  func.func @transform_1(%arg0: i32) -> (i32, i32) {
    %c0_i32 = arith.constant 0 : i32
    %c0_i32_0 = arith.constant 0 : i32
    %c0_i32_1 = arith.constant 0 : i32
    return %c0_i32, %c0_i32_0 : i32, i32
  }
  func.func @transform_2(%arg0: i32) -> (i32, i32) {
    %c0_i32 = arith.constant 0 : i32
    %c0_i32_0 = arith.constant 0 : i32
    return %arg0, %c0_i32 : i32, i32
  }
}

</mosaic_0001>

<llo_original>
// kernel: tpu_custom_call.1
$region0: #{tpu_custom_call.1}
  #allocation0 [shape = 'u32[]', space=smem, size = 0x4, offset = 0x4, fixed_abs, tag = 'smem constant byte address 0x4 - core index']
  #allocation1 [shape = 'u32[144,128]{1,0:T(1,128)}', space=vmem, size = 0x12000, scoped, tag = 'internal scratch']
  %s0 = inlined_call_operand.hbm [shape: bf16[128,128], index: 0, kind: input, shape index: {}]
  %s1 = inlined_call_operand.hbm [shape: bf16[128,128], index: 1, kind: input, shape index: {}]
  %s2 = inlined_call_operand.hbm [shape: bf16[128,128], index: 2, kind: output, shape index: {}]
  %s3 = sld [smem:[#allocation0]]
  $region26: #{tpu_custom_call.1} parent=0
    _
  %s5 = ssub.s32 1, %s3
  %s6 = scalar_select 0, %s5, %s3
  $region1: #{tpu_custom_call.1} parent=0
    #allocation2 [shape = 'u8[32768]{0}', space=vmem, size = 0x8000, scoped, tag = 'input window, operand 0, single buffered']
    #allocation3 [shape = 's32[1]{0}', space=sflag, size = 0x4, scoped, tag = 'scoped memory for tpu_custom_call.1']
    #allocation4 [shape = 's32[1]{0}', space=sflag, size = 0x4, scoped, tag = 'scoped memory for tpu_custom_call.1']
    #allocation5 [shape = 'u8[32768]{0}', space=vmem, size = 0x8000, scoped, tag = 'input window, operand 1, single buffered']
    #allocation6 [shape = 's32[1]{0}', space=sflag, size = 0x4, scoped, tag = 'scoped memory for tpu_custom_call.1']
    #allocation7 [shape = 'u8[32768]{0}', space=vmem, size = 0x8000, scoped, tag = 'output window, operand 0, single buffered']
    %7 = vsyncpa [#allocation3], 0
    %8 = vsyncpa [#allocation6], 0
    %9 = vsyncpa [#allocation4], 0
    // Predicated region
    $region2: #{tpu_custom_call.1} parent=1 // pred_check
      _
    $region3: #{tpu_custom_call.1} parent=1 // pred_check_branch
      %11 = sbr.rel (0) target = $region5
    $region4: #{tpu_custom_call.1} parent=1 // pred_region
      %s13 = ssub.s32 1024, 1024
      %14 = vsyncadd [#allocation3], %s13
      %s15 = sshll.u32 [#allocation2], 4
      %s16 = int_to_ptr.vmem [resolvable:$true] %s15
      %21 = dma.hbm_to_vmem [thread:$0]  %s0, 1024, %s16, [#allocation3], 64, 64, 4
    $region5: #{tpu_custom_call.1} parent=1 // pred_fallthru
      _
    // Predicated region
    $region6: #{tpu_custom_call.1} parent=1 // pred_check
      _
    $region7: #{tpu_custom_call.1} parent=1 // pred_check_branch
      %23 = sbr.rel (0) target = $region9
    $region8: #{tpu_custom_call.1} parent=1 // pred_region
      %s25 = ssub.s32 1024, 1024
      %26 = vsyncadd [#allocation6], %s25
      %s27 = sshll.u32 [#allocation5], 4
      %s28 = int_to_ptr.vmem [resolvable:$true] %s27
      %33 = dma.hbm_to_vmem [thread:$0]  %s1, 1024, %s28, [#allocation6], 64, 64, 4
    $region9: #{tpu_custom_call.1} parent=1 // pred_fallthru
      _
    // Predicated region
    $region10: #{tpu_custom_call.1} parent=1 // pred_check
      _
    $region11: #{tpu_custom_call.1} parent=1 // pred_check_branch
      %35 = sbr.rel (0) target = $region13
    $region12: #{tpu_custom_call.1} parent=1 // pred_region
      %36 = dma.done [#allocation3], 1024
    $region13: #{tpu_custom_call.1} parent=1 // pred_fallthru
      _
    // Predicated region
    $region14: #{tpu_custom_call.1} parent=1 // pred_check
      _
    $region15: #{tpu_custom_call.1} parent=1 // pred_check_branch
      %38 = sbr.rel (0) target = $region17
    $region16: #{tpu_custom_call.1} parent=1 // pred_region
      %39 = dma.done [#allocation6], 1024
    $region17: #{tpu_custom_call.1} parent=1 // pred_fallthru
      _
    %v41 = vld [vmem:[#allocation2] sm:$0xf]
    %v42 = vld [vmem:[#allocation2 + $0x4] sm:$0xf]
    %v43 = vld [vmem:[#allocation2 + $0x8] sm:$0xf]
    %v44 = vld [vmem:[#allocation2 + $0xc] sm:$0xf]
    %v45 = vld [vmem:[#allocation2 + $0x10] sm:$0xf]
    %v46 = vld [vmem:[#allocation2 + $0x14] sm:$0xf]
    %v47 = vld [vmem:[#allocation2 + $0x18] sm:$0xf]
    %v48 = vld [vmem:[#allocation2 + $0x1c] sm:$0xf]
    %v49 = vld [vmem:[#allocation2 + $0x20] sm:$0xf]
    %v50 = vld [vmem:[#allocation2 + $0x24] sm:$0xf]
    %v51 = vld [vmem:[#allocation2 + $0x28] sm:$0xf]
    %v52 = vld [vmem:[#allocation2 + $0x2c] sm:$0xf]
    %v53 = vld [vmem:[#allocation2 + $0x30] sm:$0xf]
    %v54 = vld [vmem:[#allocation2 + $0x34] sm:$0xf]
    %v55 = vld [vmem:[#allocation2 + $0x38] sm:$0xf]
    %v56 = vld [vmem:[#allocation2 + $0x3c] sm:$0xf]
    %v57 = vld [vmem:[#allocation5] sm:$0xf]
    %v58 = vld [vmem:[#allocation5 + $0x4] sm:$0xf]
    %v59 = vld [vmem:[#allocation5 + $0x8] sm:$0xf]
    %v60 = vld [vmem:[#allocation5 + $0xc] sm:$0xf]
    %v61 = vld [vmem:[#allocation5 + $0x10] sm:$0xf]
    %v62 = vld [vmem:[#allocation5 + $0x14] sm:$0xf]
    %v63 = vld [vmem:[#allocation5 + $0x18] sm:$0xf]
    %v64 = vld [vmem:[#allocation5 + $0x1c] sm:$0xf]
    %v65 = vld [vmem:[#allocation5 + $0x20] sm:$0xf]
    %v66 = vld [vmem:[#allocation5 + $0x24] sm:$0xf]
    %v67 = vld [vmem:[#allocation5 + $0x28] sm:$0xf]
    %v68 = vld [vmem:[#allocation5 + $0x2c] sm:$0xf]
    %v69 = vld [vmem:[#allocation5 + $0x30] sm:$0xf]
    %v70 = vld [vmem:[#allocation5 + $0x34] sm:$0xf]
    %v71 = vld [vmem:[#allocation5 + $0x38] sm:$0xf]
    %v72 = vld [vmem:[#allocation5 + $0x3c] sm:$0xf]
    %v89 = vunpack.c.l.b16 %v41
    %v90 = vunpack.c.l.b16 %v42
    %v91 = vunpack.c.l.b16 %v43
    %v92 = vunpack.c.l.b16 %v44
    %v93 = vunpack.c.l.b16 %v45
    %v94 = vunpack.c.l.b16 %v46
    %v95 = vunpack.c.l.b16 %v47
    %v96 = vunpack.c.l.b16 %v48
    %v97 = vunpack.c.l.b16 %v49
    %v98 = vunpack.c.l.b16 %v50
    %v99 = vunpack.c.l.b16 %v51
    %v100 = vunpack.c.l.b16 %v52
    %v101 = vunpack.c.l.b16 %v53
    %v102 = vunpack.c.l.b16 %v54
    %v103 = vunpack.c.l.b16 %v55
    %v104 = vunpack.c.l.b16 %v56
    %v105 = vpack.c.b16 %v90, %v89
    %v106 = vpack.c.b16 %v92, %v91
    %v107 = vpack.c.b16 %v94, %v93
    %v108 = vpack.c.b16 %v96, %v95
    %v109 = vpack.c.b16 %v98, %v97
    %v110 = vpack.c.b16 %v100, %v99
    %v111 = vpack.c.b16 %v102, %v101
    %v112 = vpack.c.b16 %v104, %v103
    %v137 = vunpack.c.l.b16 %v57
    %v138 = vunpack.c.l.b16 %v58
    %v139 = vunpack.c.l.b16 %v59
    %v140 = vunpack.c.l.b16 %v60
    %v141 = vunpack.c.l.b16 %v61
    %v142 = vunpack.c.l.b16 %v62
    %v143 = vunpack.c.l.b16 %v63
    %v144 = vunpack.c.l.b16 %v64
    %v145 = vunpack.c.l.b16 %v65
    %v146 = vunpack.c.l.b16 %v66
    %v147 = vunpack.c.l.b16 %v67
    %v148 = vunpack.c.l.b16 %v68
    %v149 = vunpack.c.l.b16 %v69
    %v150 = vunpack.c.l.b16 %v70
    %v151 = vunpack.c.l.b16 %v71
    %v152 = vunpack.c.l.b16 %v72
    %v153 = vpack.c.b16 %v138, %v137
    %v154 = vpack.c.b16 %v140, %v139
    %v155 = vpack.c.b16 %v142, %v141
    %v156 = vpack.c.b16 %v144, %v143
    %v157 = vpack.c.b16 %v146, %v145
    %v158 = vpack.c.b16 %v148, %v147
    %v159 = vpack.c.b16 %v150, %v149
    %v160 = vpack.c.b16 %v152, %v151
    %169 = vmatprep.subr.bf16.mxu0 0
    %170 = vmatpush1.bf16.msra.mxu0 %v153
    %171 = vmatprep.subr.bf16.mxu0 0
    %172 = vmatpush1.bf16.msra.mxu0 %v154
    %173 = vmatprep.subr.bf16.mxu0 0
    %174 = vmatpush1.bf16.msra.mxu0 %v155
    %175 = vmatprep.subr.bf16.mxu0 0
    %176 = vmatpush1.bf16.msra.mxu0 %v156
    %177 = vmatprep.subr.bf16.mxu0 0
    %178 = vmatpush1.bf16.msra.mxu0 %v157
    %179 = vmatprep.subr.bf16.mxu0 0
    %180 = vmatpush1.bf16.msra.mxu0 %v158
    %181 = vmatprep.subr.bf16.mxu0 0
    %182 = vmatpush1.bf16.msra.mxu0 %v159
    %183 = vmatprep.subr.bf16.mxu0 0
    %184 = vmatpush1.bf16.msra.mxu0 %v160
    %185 = vmatprep.subr.bf16.mxu0 0
    %186 = vmatpush1.bf16.msra.mxu0 0
    %187 = vmatprep.subr.bf16.mxu0 0
    %188 = vmatpush1.bf16.msra.mxu0 0
    %189 = vmatprep.subr.bf16.mxu0 0
    %190 = vmatpush1.bf16.msra.mxu0 0
    %191 = vmatprep.subr.bf16.mxu0 0
    %192 = vmatpush1.bf16.msra.mxu0 0
    %193 = vmatprep.subr.bf16.mxu0 0
    %194 = vmatpush1.bf16.msra.mxu0 0
    %195 = vmatprep.subr.bf16.mxu0 0
    %196 = vmatpush1.bf16.msra.mxu0 0
    %197 = vmatprep.subr.bf16.mxu0 0
    %198 = vmatpush1.bf16.msra.mxu0 0
    %199 = vmatprep.subr.bf16.mxu0 0
    %200 = vmatpush1.bf16.msra.mxu0 0
    %201 = vmatprep.mubr.bf16.mxu0 0
    %202 = vmatmul.mubr.bf16.gmra.mrb[0].mxu0 %v105
    %v203 = vpop.f32.mrb[0].mxu0
    %v204 = vadd.f32 0.0, %v203
    %v205 = vpop.f32.mrb[0].mxu0
    %v206 = vpop.f32.mrb[0].mxu0
    %v207 = vadd.f32 0.0, %v206
    %v208 = vpop.f32.mrb[0].mxu0
    %209 = vmatprep.mubr.bf16.mxu0 0
    %210 = vmatmul.mubr.bf16.gmra.mrb[0].mxu0 %v106
    %v211 = vpop.f32.mrb[0].mxu0
    %v212 = vadd.f32 0.0, %v211
    %v213 = vpop.f32.mrb[0].mxu0
    %v214 = vpop.f32.mrb[0].mxu0
    %v215 = vadd.f32 0.0, %v214
    %v216 = vpop.f32.mrb[0].mxu0
    %217 = vmatprep.mubr.bf16.mxu0 0
    %218 = vmatmul.mubr.bf16.gmra.mrb[0].mxu0 %v107
    %v219 = vpop.f32.mrb[0].mxu0
    %v220 = vadd.f32 0.0, %v219
    %v221 = vpop.f32.mrb[0].mxu0
    %v222 = vpop.f32.mrb[0].mxu0
    %v223 = vadd.f32 0.0, %v222
    %v224 = vpop.f32.mrb[0].mxu0
    %225 = vmatprep.mubr.bf16.mxu0 0
    %226 = vmatmul.mubr.bf16.gmra.mrb[0].mxu0 %v108
    %v227 = vpop.f32.mrb[0].mxu0
    %v228 = vadd.f32 0.0, %v227
    %v229 = vpop.f32.mrb[0].mxu0
    %v230 = vpop.f32.mrb[0].mxu0
    %v231 = vadd.f32 0.0, %v230
    %v232 = vpop.f32.mrb[0].mxu0
    %233 = vmatprep.mubr.bf16.mxu0 0
    %234 = vmatmul.mubr.bf16.gmra.mrb[0].mxu0 %v109
    %v235 = vpop.f32.mrb[0].mxu0
    %v236 = vadd.f32 0.0, %v235
    %v237 = vpop.f32.mrb[0].mxu0
    %v238 = vpop.f32.mrb[0].mxu0
    %v239 = vadd.f32 0.0, %v238
    %v240 = vpop.f32.mrb[0].mxu0
    %241 = vmatprep.mubr.bf16.mxu0 0
    %242 = vmatmul.mubr.bf16.gmra.mrb[0].mxu0 %v110
    %v243 = vpop.f32.mrb[0].mxu0
    %v244 = vadd.f32 0.0, %v243
    %v245 = vpop.f32.mrb[0].mxu0
    %v246 = vpop.f32.mrb[0].mxu0
    %v247 = vadd.f32 0.0, %v246
    %v248 = vpop.f32.mrb[0].mxu0
    %249 = vmatprep.mubr.bf16.mxu0 0
    %250 = vmatmul.mubr.bf16.gmra.mrb[0].mxu0 %v111
    %v251 = vpop.f32.mrb[0].mxu0
    %v252 = vadd.f32 0.0, %v251
    %v253 = vpop.f32.mrb[0].mxu0
    %v254 = vpop.f32.mrb[0].mxu0
    %v255 = vadd.f32 0.0, %v254
    %v256 = vpop.f32.mrb[0].mxu0
    %257 = vmatprep.mubr.bf16.mxu0 0
    %258 = vmatmul.mubr.bf16.gmra.mrb[0].mxu0 %v112
    %v259 = vpop.f32.mrb[0].mxu0
    %v260 = vadd.f32 0.0, %v259
    %v261 = vpop.f32.mrb[0].mxu0
    %v262 = vpop.f32.mrb[0].mxu0
    %v263 = vadd.f32 0.0, %v262
    %v264 = vpop.f32.mrb[0].mxu0
    %265 = vdwg.mxu0
    %v266 = vlaneseq
    %v267 = vand.u32 %v266, 127
    %vm268 = vcmp.eq.s32.totalorder %v267, 34
    %v269 = vsel %vm268, 1.0, %v204
    %v270 = vsel %vm268, 1.0, %v207
    %v271 = vsel %vm268, 1.0, %v212
    %v272 = vsel %vm268, 1.0, %v215
    %v273 = vsel %vm268, 1.0, %v220
    %v274 = vsel %vm268, 1.0, %v223
    %v275 = vsel %vm268, 1.0, %v228
    %v276 = vsel %vm268, 1.0, %v231
    %v277 = vsel %vm268, 1.0, %v236
    %v278 = vsel %vm268, 1.0, %v239
    %v279 = vsel %vm268, 1.0, %v244
    %v280 = vsel %vm268, 1.0, %v247
    %v281 = vsel %vm268, 1.0, %v252
    %v282 = vsel %vm268, 1.0, %v255
    %v283 = vsel %vm268, 1.0, %v260
    %v284 = vsel %vm268, 1.0, %v263
    %v285 = vpack.c.bf16 %v270, %v269
    %v286 = vpack.c.bf16 %v272, %v271
    %v287 = vpack.c.bf16 %v274, %v273
    %v288 = vpack.c.bf16 %v276, %v275
    %v289 = vpack.c.bf16 %v278, %v277
    %v290 = vpack.c.bf16 %v280, %v279
    %v291 = vpack.c.bf16 %v282, %v281
    %v292 = vpack.c.bf16 %v284, %v283
    %v301 = vunpack.c.l.b16 %v285
    %v302 = vunpack.c.h.b16 %v285
    %v303 = vunpack.c.l.b16 %v286
    %v304 = vunpack.c.h.b16 %v286
    %v305 = vunpack.c.l.b16 %v287
    %v306 = vunpack.c.h.b16 %v287
    %v307 = vunpack.c.l.b16 %v288
    %v308 = vunpack.c.h.b16 %v288
    %v309 = vunpack.c.l.b16 %v289
    %v310 = vunpack.c.h.b16 %v289
    %v311 = vunpack.c.l.b16 %v290
    %v312 = vunpack.c.h.b16 %v290
    %v313 = vunpack.c.l.b16 %v291
    %v314 = vunpack.c.h.b16 %v291
    %v315 = vunpack.c.l.b16 %v292
    %v316 = vunpack.c.h.b16 %v292
    %v317 = vpack.c.b16 %v301, %v301
    %v318 = vpack.c.b16 %v302, %v302
    %v319 = vpack.c.b16 %v303, %v303
    %v320 = vpack.c.b16 %v304, %v304
    %v321 = vpack.c.b16 %v305, %v305
    %v322 = vpack.c.b16 %v306, %v306
    %v323 = vpack.c.b16 %v307, %v307
    %v324 = vpack.c.b16 %v308, %v308
    %v325 = vpack.c.b16 %v309, %v309
    %v326 = vpack.c.b16 %v310, %v310
    %v327 = vpack.c.b16 %v311, %v311
    %v328 = vpack.c.b16 %v312, %v312
    %v329 = vpack.c.b16 %v313, %v313
    %v330 = vpack.c.b16 %v314, %v314
    %v331 = vpack.c.b16 %v315, %v315
    %v332 = vpack.c.b16 %v316, %v316
    %349 = vst [vmem:[#allocation7] sm:$0xf] %v317
    %350 = vst [vmem:[#allocation7 + $0x4] sm:$0xf] %v318
    %351 = vst [vmem:[#allocation7 + $0x8] sm:$0xf] %v319
    %352 = vst [vmem:[#allocation7 + $0xc] sm:$0xf] %v320
    %353 = vst [vmem:[#allocation7 + $0x10] sm:$0xf] %v321
    %354 = vst [vmem:[#allocation7 + $0x14] sm:$0xf] %v322
    %355 = vst [vmem:[#allocation7 + $0x18] sm:$0xf] %v323
    %356 = vst [vmem:[#allocation7 + $0x1c] sm:$0xf] %v324
    %357 = vst [vmem:[#allocation7 + $0x20] sm:$0xf] %v325
    %358 = vst [vmem:[#allocation7 + $0x24] sm:$0xf] %v326
    %359 = vst [vmem:[#allocation7 + $0x28] sm:$0xf] %v327
    %360 = vst [vmem:[#allocation7 + $0x2c] sm:$0xf] %v328
    %361 = vst [vmem:[#allocation7 + $0x30] sm:$0xf] %v329
    %362 = vst [vmem:[#allocation7 + $0x34] sm:$0xf] %v330
    %363 = vst [vmem:[#allocation7 + $0x38] sm:$0xf] %v331
    %364 = vst [vmem:[#allocation7 + $0x3c] sm:$0xf] %v332
    // Predicated region
    $region18: #{tpu_custom_call.1} parent=1 // pred_check
      _
    $region19: #{tpu_custom_call.1} parent=1 // pred_check_branch
      %366 = sbr.rel (0) target = $region21
    $region20: #{tpu_custom_call.1} parent=1 // pred_region
      %s368 = ssub.s32 1024, 1024
      %369 = vsyncadd [#allocation4], %s368
      %s370 = sshll.u32 [#allocation7], 4
      %s371 = int_to_ptr.vmem [resolvable:$true] %s370
      %376 = dma.vmem_to_hbm [thread:$0]  %s371, 1024, %s2, [#allocation4], 64, 64, 4
    $region21: #{tpu_custom_call.1} parent=1 // pred_fallthru
      _
    // Predicated region
    $region22: #{tpu_custom_call.1} parent=1 // pred_check
      _
    $region23: #{tpu_custom_call.1} parent=1 // pred_check_branch
      %378 = sbr.rel (0) target = $region25
    $region24: #{tpu_custom_call.1} parent=1 // pred_region
      %379 = dma.done [#allocation4], 1024
    $region25: #{tpu_custom_call.1} parent=1 // pred_fallthru
      _
    %380 = vsyncpa [#allocation3], 1
    %381 = vsyncpa [#allocation6], 1
    %382 = vsyncpa [#allocation4], 1

</llo_original>
